<compile_context>
chip_gen: v7x
topology: tpu7x:2x2x1
jax: 0.10.0
libtpu: 0.0.40
codegen_flags: <defaults>
</compile_context>

<pallas_src>
import numpy as np
import jax
import jax.numpy as jnp
from jax.experimental import pallas as pl
from jax.experimental.pallas import tpu as pltpu

HIDDEN = 128     # surrogate hidden width (lane-aligned)
OUT_PAD = 128    # lane-dense padded output width (real output is 6)
TK = 512         # reduction-axis tile for the fused first-layer matmul

# ----------------------------------------------------------------------------
# SE(3) helpers (plain JAX glue: 4x4 ops, exact closed forms as in se3.exp/log)
# ----------------------------------------------------------------------------

def _skew(w):
    wx, wy, wz = w[..., 0], w[..., 1], w[..., 2]
    z = jnp.zeros_like(wx)
    return jnp.stack([
        jnp.stack([z, -wz, wy], axis=-1),
        jnp.stack([wz, z, -wx], axis=-1),
        jnp.stack([-wy, wx, z], axis=-1),
    ], axis=-2)


def se3_exp(xi):
    """xi: (..., 6) twist [omega, v] -> (..., 4, 4) homogeneous transform."""
    w, v = xi[..., :3], xi[..., 3:]
    theta = jnp.linalg.norm(w, axis=-1, keepdims=True)[..., None]      # (...,1,1)
    theta2 = theta * theta
    small = theta < 1e-4
    safe_t = jnp.where(small, 1.0, theta)
    A = jnp.where(small, 1.0 - theta2 / 6.0, jnp.sin(theta) / safe_t)
    Bc = jnp.where(small, 0.5 - theta2 / 24.0, (1.0 - jnp.cos(theta)) / (safe_t * safe_t))
    Cc = jnp.where(small, 1.0 / 6.0 - theta2 / 120.0,
                   (theta - jnp.sin(theta)) / (safe_t * safe_t * safe_t))
    W = _skew(w)
    W2 = W @ W
    I3 = jnp.eye(3, dtype=xi.dtype)
    R = I3 + A * W + Bc * W2
    V = I3 + Bc * W + Cc * W2
    t = (V @ v[..., None])
    top = jnp.concatenate([R, t], axis=-1)                              # (...,3,4)
    bottom = jnp.broadcast_to(jnp.array([0.0, 0.0, 0.0, 1.0], dtype=xi.dtype),
                              top.shape[:-2] + (1, 4))
    return jnp.concatenate([top, bottom], axis=-2)


def se3_log(H):
    """H: (..., 4, 4) -> (..., 6) twist [omega, v].  All divides use guarded denominators
    so the un-taken jnp.where branch never produces NaN (grad-safe)."""
    # TODO(synk): rotations at exactly theta == pi need the dedicated axis extraction
    # formula; here they are only NaN-guarded (not exercised by the diffuser's small twists).
    R = H[..., :3, :3]
    t = H[..., :3, 3]
    tr = R[..., 0, 0] + R[..., 1, 1] + R[..., 2, 2]
    cos_theta = jnp.clip((tr - 1.0) / 2.0, -1.0, 1.0)
    theta = jnp.arccos(cos_theta)[..., None, None]
    theta2 = theta * theta
    small = theta < 1e-4
    sin_t = jnp.sin(theta)
    cos_t = jnp.cos(theta)
    safe_sin = jnp.where(jnp.abs(sin_t) < 1e-6, 1.0, sin_t)
    coef = jnp.where(small, 0.5 + theta2 / 12.0, theta / (2.0 * safe_sin))
    Wlog = coef * (R - jnp.swapaxes(R, -1, -2))
    w = jnp.stack([Wlog[..., 2, 1], Wlog[..., 0, 2], Wlog[..., 1, 0]], axis=-1)
    Wm = _skew(w)
    Wm2 = Wm @ Wm
    denom = 2.0 * (1.0 - cos_t)
    safe_denom = jnp.where(jnp.abs(denom) < 1e-8, 1.0, denom)
    safe_theta2 = jnp.where(small, 1.0, theta2)
    D = jnp.where(small, 1.0 / 12.0 + theta2 / 720.0,
                  (1.0 - theta * sin_t / safe_denom) / safe_theta2)
    Vinv = jnp.eye(3, dtype=H.dtype) - 0.5 * Wm + D * Wm2
    v = (Vinv @ t[..., None])[..., 0]
    return jnp.concatenate([w, v], axis=-1)


def inv_pose(H):
    R = H[..., :3, :3]
    t = H[..., :3, 3]
    Rt = jnp.swapaxes(R, -1, -2)
    ti = -(Rt @ t[..., None])
    top = jnp.concatenate([Rt, ti], axis=-1)
    bottom = jnp.broadcast_to(jnp.array([0.0, 0.0, 0.0, 1.0], dtype=H.dtype),
                              top.shape[:-2] + (1, 4))
    return jnp.concatenate([top, bottom], axis=-2)


# ----------------------------------------------------------------------------
# Diffusion scheduler (deterministic, linear beta schedule)
# ----------------------------------------------------------------------------

TRAIN_SCHEDULER_ARGV = dict(n_diff_steps=10, beta_start=1e-4, beta_end=0.05,
                            add_noise=True, sigma_r=0.1, sigma_t=0.1)


def make_scheduler(argv):
    n = argv["n_diff_steps"]
    betas = jnp.concatenate(
        [jnp.zeros((1,), jnp.float32),
         jnp.linspace(argv["beta_start"], argv["beta_end"], n, dtype=jnp.float32)])
    alphas = 1.0 - betas
    alpha_bars = jnp.cumprod(alphas)
    return dict(betas=betas, alpha_bars=alpha_bars)


# ----------------------------------------------------------------------------
# Pallas kernel: fused surrogate MLP (K-tiled first layer + resident tail)
# ----------------------------------------------------------------------------

def _surrogate_kernel(x_ref, w1_ref, b1_ref, w2_ref, b2_ref, w3_ref, b3_ref,
                      out_ref, acc_ref):
    k = pl.program_id(0)

    @pl.when(k == 0)
    def _init():
        acc_ref[...] = jnp.zeros_like(acc_ref)

    # Fused first layer: (B, tk) bf16 @ (tk, H) bf16 -> f32 accumulation.
    acc_ref[...] += jnp.dot(x_ref[...], w1_ref[...],
                            preferred_element_type=jnp.float32)

    @pl.when(k == pl.num_programs(0) - 1)
    def _finalize():
        # Bias / ReLU in f32 (v5e VPU has no bf16 path); cast only for the MXU pushes.
        h1 = jnp.maximum(acc_ref[...] + b1_ref[...], 0.0)
        h2 = jnp.dot(h1.astype(jnp.bfloat16), w2_ref[...],
                     preferred_element_type=jnp.float32) + b2_ref[...]
        h2 = jnp.maximum(h2, 0.0)
        out = jnp.dot(h2.astype(jnp.bfloat16), w3_ref[...],
                      preferred_element_type=jnp.float32) + b3_ref[...]
        out_ref[...] = out.astype(out_ref.dtype)   # lane-dense (B, 128) store


@jax.jit
def surrogate_forward(params, img, pcd, pose):
    """Synthetic surrogate: (img NCHW, pcd (B,N,3), pose (B,4,4)) -> twist (B,6)."""
    B = img.shape[0]
    Dimg = int(np.prod(img.shape[1:]))
    img_flat = img.reshape(B, Dimg).astype(jnp.float32)
    pose = pose.astype(jnp.float32)
    pose_flat = pose.reshape(B, 16)

    # Pool-before-project (linearity of the mean over points):
    #   mean_n(pcdh @ pose^T) == mean_n(pcdh) @ pose^T
    centroid = jnp.mean(pcd.astype(jnp.float32), axis=1)                       # (B, 3)
    centroid_h = jnp.concatenate([centroid, jnp.ones((B, 1), jnp.float32)], -1)  # (B, 4)
    mean_pcd_cam = jnp.einsum("bi,bji->bj", centroid_h, pose)                  # (B, 4)

    # Fuse the three first-layer matmuls into one (B, K) @ (K, HIDDEN).
    x_all = jnp.concatenate([img_flat, pose_flat, mean_pcd_cam], axis=-1)      # (B, K)
    w_all = jnp.concatenate([params["w_img"], params["w_pose"], params["w_pcd"]], axis=0)
    K = Dimg + 16 + 4
    nk = pl.cdiv(K, TK)
    Kpad = nk * TK
    x_all = jnp.pad(x_all, ((0, 0), (0, Kpad - K))).astype(jnp.bfloat16)
    w_all = jnp.pad(w_all, ((0, Kpad - K), (0, 0))).astype(jnp.bfloat16)

    b1 = params["b1"]                                                          # (1, H) f32
    w2 = params["w_h"].astype(jnp.bfloat16)                                    # (H, H)
    b2 = params["b2"]                                                          # (1, H) f32
    # Lane-dense output: zero-pad the (H, 6) projection to 128 lanes; slice outside.
    w3 = jnp.pad(params["w_out"], ((0, 0), (0, OUT_PAD - 6))).astype(jnp.bfloat16)
    b3 = jnp.pad(params["b_out"], ((0, 0), (0, OUT_PAD - 6))).astype(jnp.float32)

    H = HIDDEN
    flops = 2 * B * (Kpad * H + H * H + H * OUT_PAD)
    bytes_accessed = ((x_all.size + w_all.size + w2.size + w3.size) * 2
                      + (b1.size + b2.size + b3.size) * 4 + B * OUT_PAD * 4)

    out = pl.pallas_call(
        _surrogate_kernel,
        out_shape=jax.ShapeDtypeStruct((B, OUT_PAD), jnp.float32),
        grid_spec=pltpu.PrefetchScalarGridSpec(
            num_scalar_prefetch=0,
            grid=(nk,),
            in_specs=[
                pl.BlockSpec((B, TK), lambda k: (0, k)),       # x tile
                pl.BlockSpec((TK, H), lambda k: (k, 0)),       # fused W1 tile
                pl.BlockSpec((1, H), lambda k: (0, 0)),        # b1
                pl.BlockSpec((H, H), lambda k: (0, 0)),        # W2
                pl.BlockSpec((1, H), lambda k: (0, 0)),        # b2
                pl.BlockSpec((H, OUT_PAD), lambda k: (0, 0)),  # W3 (padded)
                pl.BlockSpec((1, OUT_PAD), lambda k: (0, 0)),  # b3 (padded)
            ],
            out_specs=pl.BlockSpec((B, OUT_PAD), lambda k: (0, 0)),
            scratch_shapes=[pltpu.VMEM((B, H), jnp.float32)],
        ),
        compiler_params=pltpu.CompilerParams(
            dimension_semantics=("arbitrary",)),
        cost_estimate=pl.CostEstimate(flops=flops, transcendentals=0,
                                      bytes_accessed=bytes_accessed),
    )(x_all, w_all, b1, w2, b2, w3, b3)
    return out[:, :6]


# ----------------------------------------------------------------------------
# Parameter init (deterministic, shapes implied by the synthetic surrogate)
# ----------------------------------------------------------------------------

def init_params(key, C, Himg, Wimg, hidden=HIDDEN):
    Dimg = C * Himg * Wimg
    ks = jax.random.split(key, 5)
    return {
        "w_img": jax.random.normal(ks[0], (Dimg, hidden), jnp.float32) / np.sqrt(Dimg),
        "w_pcd": jax.random.normal(ks[1], (4, hidden), jnp.float32) * 0.5,
        "w_pose": jax.random.normal(ks[2], (16, hidden), jnp.float32) * 0.25,
        "b1": jnp.zeros((1, hidden), jnp.float32),
        "w_h": jax.random.normal(ks[3], (hidden, hidden), jnp.float32) / np.sqrt(hidden),
        "b2": jnp.zeros((1, hidden), jnp.float32),
        "w_out": jax.random.normal(ks[4], (hidden, 6), jnp.float32) * 0.01,
        "b_out": jnp.zeros((1, 6), jnp.float32),
    }


# ----------------------------------------------------------------------------
# SE3Diffuser.forward
# ----------------------------------------------------------------------------

def se3_diffuser_forward(params, sched, argv, H_0, x_cond, key):
    img, pcd, Tcl, camera_info = x_cond   # camera_info unused by the synthetic surrogate
    # TODO(synk): the abstract Surrogate / user loss_fn are replaced by a synthetic MLP + MSE.
    B = H_0.shape[0]
    H_T = jnp.broadcast_to(jnp.eye(4, dtype=H_0.dtype), (B, 4, 4))

    x0 = se3_log(H_0)                                                   # (B, 6)

    k_tau, k_noise = jax.random.split(key)
    taus = jax.random.randint(k_tau, (B,), 1, argv["n_diff_steps"] + 1)  # uniform_sample_t
    alpha_bars = sched["alpha_bars"][taus][:, None]                      # (B, 1)

    H_t = se3_exp((1.0 - jnp.sqrt(alpha_bars)) * se3_log(H_T @ inv_pose(H_0))) @ H_0

    if argv["add_noise"]:
        scale = jnp.concatenate([jnp.ones(3) * argv["sigma_r"],
                                 jnp.ones(3) * argv["sigma_t"]]).astype(H_0.dtype)[None]
        noise = jnp.sqrt(1.0 - alpha_bars) * scale * \
            jnp.clip(jax.random.normal(k_noise, (B, 6), H_0.dtype), -3.0, 3.0)
        H_noise = se3_exp(noise)
        H_t_noise = H_noise @ H_t
    else:
        H_t_noise = H_t

    pred_x = surrogate_forward(params, img, pcd, H_t_noise @ Tcl)       # Pallas hot path
    x0_hat = se3_log(se3_exp(pred_x) @ H_t_noise)
    loss = jnp.mean((x0_hat - x0) ** 2)                                 # tiny reduction: plain JAX
    return loss, x0_hat


# ----------------------------------------------------------------------------
# Demo
# ----------------------------------------------------------------------------

if __name__ == "__main__":
    key = jax.random.PRNGKey(0)
    k_img, k_pcd, k_tcl, k_h0, k_par, k_fwd = jax.random.split(key, 6)

    B, C, Hh, W, N = 2, 4, 16, 16, 128
    img = jax.random.normal(k_img, (B, C, Hh, W), jnp.float32)          # NCHW
    pcd = jax.random.normal(k_pcd, (B, N, 3), jnp.float32)
    Tcl = se3_exp(0.10 * jax.random.normal(k_tcl, (B, 6), jnp.float32))
    H_0 = se3_exp(0.20 * jax.random.normal(k_h0, (B, 6), jnp.float32))
    camera_info = {"fx": 500.0, "fy": 500.0, "cx": 8.0, "cy": 8.0}

    params = init_params(k_par, C, Hh, W)
    sched = make_scheduler(TRAIN_SCHEDULER_ARGV)

    loss, x0_hat = se3_diffuser_forward(
        params, sched, TRAIN_SCHEDULER_ARGV, H_0, (img, pcd, Tcl, camera_info), k_fwd)
    loss, x0_hat = jax.block_until_ready((loss, x0_hat))

    assert x0_hat.shape == (B, 6)
    assert bool(jnp.isfinite(loss)) and bool(jnp.all(jnp.isfinite(x0_hat)))
    print("KERNEL_OK")
</pallas_src>

<mosaic_0001>
module attributes {stable_mosaic.version = 11 : i64} {
  func.func @_surrogate_kernel(%arg0: i32, %arg1: memref<2x512xbf16, #tpu.memory_space<vmem>>, %arg2: memref<512x128xbf16, #tpu.memory_space<vmem>>, %arg3: memref<1x128xf32, #tpu.memory_space<vmem>>, %arg4: memref<128x128xbf16, #tpu.memory_space<vmem>>, %arg5: memref<1x128xf32, #tpu.memory_space<vmem>>, %arg6: memref<128x128xbf16, #tpu.memory_space<vmem>>, %arg7: memref<1x128xf32, #tpu.memory_space<vmem>>, %arg8: memref<2x128xf32, #tpu.memory_space<vmem>>, %arg9: memref<2x128xf32, #tpu.memory_space<vmem>>) attributes {dimension_semantics = [#tpu.dimension_semantics<arbitrary>], iteration_bounds = array<i64: 3>, scalar_prefetch = 0 : i64, scratch_operands = 1 : i64, tpu.core_type = #tpu.core_type<tc>, window_params = [{transform_indices = @transform_0, window_bounds = array<i64: 2, 512>}, {transform_indices = @transform_1, window_bounds = array<i64: 512, 128>}, {pipeline_mode = #tpu.pipeline_mode<synchronous>, transform_indices = @transform_2, window_bounds = array<i64: 1, 128>}, {pipeline_mode = #tpu.pipeline_mode<synchronous>, transform_indices = @transform_3, window_bounds = array<i64: 128, 128>}, {pipeline_mode = #tpu.pipeline_mode<synchronous>, transform_indices = @transform_4, window_bounds = array<i64: 1, 128>}, {pipeline_mode = #tpu.pipeline_mode<synchronous>, transform_indices = @transform_5, window_bounds = array<i64: 128, 128>}, {pipeline_mode = #tpu.pipeline_mode<synchronous>, transform_indices = @transform_6, window_bounds = array<i64: 1, 128>}, {pipeline_mode = #tpu.pipeline_mode<synchronous>, transform_indices = @transform_7, window_bounds = array<i64: 2, 128>}]} {
    %c0_i32 = arith.constant 0 : i32
    %0 = arith.cmpi eq, %arg0, %c0_i32 : i32
    %1 = arith.extui %0 : i1 to i32
    %c0_i32_0 = arith.constant 0 : i32
    %2 = arith.cmpi ne, %1, %c0_i32_0 : i32
    scf.if %2 {
      %cst_9 = arith.constant 0.000000e+00 : f32
      %12 = vector.broadcast %cst_9 : f32 to vector<2x128xf32>
      %c0_10 = arith.constant 0 : index
      %c0_11 = arith.constant 0 : index
      %13 = vector.load %arg9[%c0_10, %c0_11] : memref<2x128xf32, #tpu.memory_space<vmem>>, vector<2x128xf32>
      tpu.vector_store %arg9[%c0_10, %c0_11], %12 {strides = array<i32>} : memref<2x128xf32, #tpu.memory_space<vmem>>, vector<2x128xf32>,
    } else {
    }
    %c0 = arith.constant 0 : index
    %c0_1 = arith.constant 0 : index
    %3 = vector.load %arg9[%c0, %c0_1] : memref<2x128xf32, #tpu.memory_space<vmem>>, vector<2x128xf32>
    %c0_2 = arith.constant 0 : index
    %c0_3 = arith.constant 0 : index
    %4 = vector.load %arg1[%c0_2, %c0_3] : memref<2x512xbf16, #tpu.memory_space<vmem>>, vector<2x512xbf16>
    %c0_4 = arith.constant 0 : index
    %c0_5 = arith.constant 0 : index
    %5 = vector.load %arg2[%c0_4, %c0_5] : memref<512x128xbf16, #tpu.memory_space<vmem>>, vector<512x128xbf16>
    %cst = arith.constant dense<0.000000e+00> : vector<2x128xf32>
    %6 = tpu.matmul %4, %5, %cst {dimension_numbers = #tpu.dot_dimension_numbers<[1], [0], [0], [1], [0, 0, 1, 1], [], []>} : vector<2x512xbf16>, vector<512x128xbf16>, vector<2x128xf32> -> vector<2x128xf32>
    %7 = arith.addf %3, %6 : vector<2x128xf32>
    %c0_6 = arith.constant 0 : index
    %c0_7 = arith.constant 0 : index
    %8 = vector.load %arg9[%c0_6, %c0_7] : memref<2x128xf32, #tpu.memory_space<vmem>>, vector<2x128xf32>
    tpu.vector_store %arg9[%c0_6, %c0_7], %7 {strides = array<i32>} : memref<2x128xf32, #tpu.memory_space<vmem>>, vector<2x128xf32>,
    %c2_i32 = arith.constant 2 : i32
    %9 = arith.cmpi eq, %arg0, %c2_i32 : i32
    %10 = arith.extui %9 : i1 to i32
    %c0_i32_8 = arith.constant 0 : i32
    %11 = arith.cmpi ne, %10, %c0_i32_8 : i32
    scf.if %11 {
      %c0_9 = arith.constant 0 : index
      %c0_10 = arith.constant 0 : index
      %12 = vector.load %arg9[%c0_9, %c0_10] : memref<2x128xf32, #tpu.memory_space<vmem>>, vector<2x128xf32>
      %c0_11 = arith.constant 0 : index
      %c0_12 = arith.constant 0 : index
      %13 = vector.load %arg3[%c0_11, %c0_12] : memref<1x128xf32, #tpu.memory_space<vmem>>, vector<1x128xf32>
      %14 = vector.broadcast %13 : vector<1x128xf32> to vector<2x128xf32>
      %15 = arith.addf %12, %14 : vector<2x128xf32>
      %cst_13 = arith.constant 0.000000e+00 : f32
      %16 = vector.broadcast %cst_13 : f32 to vector<2x128xf32>
      %17 = arith.maximumf %15, %16 : vector<2x128xf32>
      %18 = arith.truncf %17 : vector<2x128xf32> to vector<2x128xbf16>
      %c0_14 = arith.constant 0 : index
      %c0_15 = arith.constant 0 : index
      %19 = vector.load %arg4[%c0_14, %c0_15] : memref<128x128xbf16, #tpu.memory_space<vmem>>, vector<128x128xbf16>
      %cst_16 = arith.constant dense<0.000000e+00> : vector<2x128xf32>
      %20 = tpu.matmul %18, %19, %cst_16 {dimension_numbers = #tpu.dot_dimension_numbers<[1], [0], [0], [1], [0, 0, 1, 1], [], []>} : vector<2x128xbf16>, vector<128x128xbf16>, vector<2x128xf32> -> vector<2x128xf32>
      %c0_17 = arith.constant 0 : index
      %c0_18 = arith.constant 0 : index
      %21 = vector.load %arg5[%c0_17, %c0_18] : memref<1x128xf32, #tpu.memory_space<vmem>>, vector<1x128xf32>
      %22 = vector.broadcast %21 : vector<1x128xf32> to vector<2x128xf32>
      %23 = arith.addf %20, %22 : vector<2x128xf32>
      %cst_19 = arith.constant 0.000000e+00 : f32
      %24 = vector.broadcast %cst_19 : f32 to vector<2x128xf32>
      %25 = arith.maximumf %23, %24 : vector<2x128xf32>
      %26 = arith.truncf %25 : vector<2x128xf32> to vector<2x128xbf16>
      %c0_20 = arith.constant 0 : index
      %c0_21 = arith.constant 0 : index
      %27 = vector.load %arg6[%c0_20, %c0_21] : memref<128x128xbf16, #tpu.memory_space<vmem>>, vector<128x128xbf16>
      %cst_22 = arith.constant dense<0.000000e+00> : vector<2x128xf32>
      %28 = tpu.matmul %26, %27, %cst_22 {dimension_numbers = #tpu.dot_dimension_numbers<[1], [0], [0], [1], [0, 0, 1, 1], [], []>} : vector<2x128xbf16>, vector<128x128xbf16>, vector<2x128xf32> -> vector<2x128xf32>
      %c0_23 = arith.constant 0 : index
      %c0_24 = arith.constant 0 : index
      %29 = vector.load %arg7[%c0_23, %c0_24] : memref<1x128xf32, #tpu.memory_space<vmem>>, vector<1x128xf32>
      %30 = vector.broadcast %29 : vector<1x128xf32> to vector<2x128xf32>
      %31 = arith.addf %28, %30 : vector<2x128xf32>
      %c0_25 = arith.constant 0 : index
      %c0_26 = arith.constant 0 : index
      %32 = vector.load %arg8[%c0_25, %c0_26] : memref<2x128xf32, #tpu.memory_space<vmem>>, vector<2x128xf32>
      tpu.vector_store %arg8[%c0_25, %c0_26], %31 {strides = array<i32>} : memref<2x128xf32, #tpu.memory_space<vmem>>, vector<2x128xf32>,
    } else {
    }
    return
  }
  func.func @transform_0(%arg0: i32) -> (i32, i32) {
    %c0_i32 = arith.constant 0 : i32
    %c0_i32_0 = arith.constant 0 : i32
    return %c0_i32, %arg0 : i32, i32
  }
  func.func @transform_1(%arg0: i32) -> (i32, i32) {
    %c0_i32 = arith.constant 0 : i32
    %c0_i32_0 = arith.constant 0 : i32
    return %arg0, %c0_i32 : i32, i32
  }
  func.func @transform_2(%arg0: i32) -> (i32, i32) {
    %c0_i32 = arith.constant 0 : i32
    %c0_i32_0 = arith.constant 0 : i32
    %c0_i32_1 = arith.constant 0 : i32
    return %c0_i32, %c0_i32_0 : i32, i32
  }
  func.func @transform_3(%arg0: i32) -> (i32, i32) {
    %c0_i32 = arith.constant 0 : i32
    %c0_i32_0 = arith.constant 0 : i32
    %c0_i32_1 = arith.constant 0 : i32
    return %c0_i32, %c0_i32_0 : i32, i32
  }
  func.func @transform_4(%arg0: i32) -> (i32, i32) {
    %c0_i32 = arith.constant 0 : i32
    %c0_i32_0 = arith.constant 0 : i32
    %c0_i32_1 = arith.constant 0 : i32
    return %c0_i32, %c0_i32_0 : i32, i32
  }
  func.func @transform_5(%arg0: i32) -> (i32, i32) {
    %c0_i32 = arith.constant 0 : i32
    %c0_i32_0 = arith.constant 0 : i32
    %c0_i32_1 = arith.constant 0 : i32
    return %c0_i32, %c0_i32_0 : i32, i32
  }
  func.func @transform_6(%arg0: i32) -> (i32, i32) {
    %c0_i32 = arith.constant 0 : i32
    %c0_i32_0 = arith.constant 0 : i32
    %c0_i32_1 = arith.constant 0 : i32
    return %c0_i32, %c0_i32_0 : i32, i32
  }
  func.func @transform_7(%arg0: i32) -> (i32, i32) {
    %c0_i32 = arith.constant 0 : i32
    %c0_i32_0 = arith.constant 0 : i32
    %c0_i32_1 = arith.constant 0 : i32
    return %c0_i32, %c0_i32_0 : i32, i32
  }
}

</mosaic_0001>

<llo_original>
// kernel: surrogate_forward.1
$region0: #{surrogate_forward.1}
  #allocation0 [shape = 'u32[]', space=smem, size = 0x4, offset = 0x4, fixed_abs, tag = 'smem constant byte address 0x4 - core index']
  #allocation1 [shape = 'u32[144,128]{1,0:T(1,128)}', space=vmem, size = 0x12000, scoped, tag = 'internal scratch']
  #allocation2 [shape = 'f32[2,128]{1,0:T(2,128)}', space=vmem, size = 0x400, scoped, tag = 'scratch operand']
  %s0 = inlined_call_operand.vmem [shape: bf16[2,1536], index: 0, kind: input, shape index: {}]
  %s1 = inlined_call_operand.vmem [shape: bf16[1536,128], index: 1, kind: input, shape index: {}]
  %s2 = inlined_call_operand.vmem [shape: f32[1,128], index: 2, kind: input, shape index: {}]
  %s3 = inlined_call_operand.vmem [shape: bf16[128,128], index: 3, kind: input, shape index: {}]
  %s4 = inlined_call_operand.vmem [shape: f32[1,128], index: 4, kind: input, shape index: {}]
  %s5 = inlined_call_operand.vmem [shape: bf16[128,128], index: 5, kind: input, shape index: {}]
  %s6 = inlined_call_operand.vmem [shape: f32[1,128], index: 6, kind: input, shape index: {}]
  %s7 = inlined_call_operand.hbm [shape: f32[2,128], index: 7, kind: output, shape index: {}]
  %s8 = sld [smem:[#allocation0]]
  $region69: #{surrogate_forward.1} parent=0
    _
  %s10 = ssub.s32 1, %s8
  %s11 = scalar_select 0, %s10, %s8
  $region1: #{surrogate_forward.1} parent=0
    #allocation3 [shape = 'u8[1024]{0}', space=vmem, size = 0x400, scoped, tag = 'output window, operand 0, single buffered']
    #allocation4 [shape = 's32[2]{0}', space=sflag, size = 0x8, scoped, tag = 'scoped memory for surrogate_forward.1']
    %12 = vsyncpa [#allocation4], 0
    loop: start=0, step=1, limit=5
    $region2: #{surrogate_forward.1} parent=1 // loop_pre_header
      _
    $region3: #{surrogate_forward.1} parent=1 // loop_header
      %s14 = sphi 0, %s18
      %p15 = scmp.ge.s32.totalorder %s14, 5
      %s24 = sphi 0, %s26
      %s27 = sphi 0, %s24
      %s28 = sphi 0, %s27
      %s44 = sphi 0, %s28
      %s50 = sphi 0, %s52
      %s53 = sphi 0, %s50
      %s54 = sphi 0, %s53
      %s70 = sphi 0, %s54
      %s74 = sphi 0, %s74
      %s76 = sphi 0, %s74
      %s77 = sphi 0, %s76
      %s91 = sphi 0, %s77
      %s95 = sphi 0, %s95
      %s97 = sphi 0, %s95
      %s98 = sphi 0, %s97
      %s112 = sphi 0, %s98
      %s116 = sphi 0, %s116
      %s118 = sphi 0, %s116
      %s119 = sphi 0, %s118
      %s133 = sphi 0, %s119
      %s137 = sphi 0, %s137
      %s139 = sphi 0, %s137
      %s140 = sphi 0, %s139
      %s154 = sphi 0, %s140
      %s158 = sphi 0, %s158
      %s160 = sphi 0, %s158
      %s161 = sphi 0, %s160
      %s175 = sphi 0, %s161
      %s179 = sphi 0, %s179
      %s181 = sphi 0, %s179
      %s182 = sphi 0, %s181
      %s196 = sphi 0, %s182
    $region4: #{surrogate_forward.1} parent=1 // loop_header_branch
      %17 = sbr.rel (%p15) target = $region8
    $region5: #{surrogate_forward.1} parent=1 // loop_body
      %s19 = ssub.s32 %s14, 1
      %s20 = ssub.s32 %s14, 2
      %s21 = sadd.s32 %s14, 1
      %s22 = ssub.s32 %s14, %s21
      %p23 = scmp.eq.s32.totalorder %s22, 0
      %s25 = sadd.s32 %s24, 1
      %s26 = scalar_select %p23, %s24, %s25
      %p29 = pneg %p23
      %p30 = scmp.eq.s32.totalorder %s14, 2
      %p31 = por %p29, %p30
      %p32 = scmp.ne.s32.totalorder %s24, %s27
      %p33 = scmp.eq.s32.totalorder %s14, 0
      %p34 = por %p32, %p33
      %p35 = scmp.ne.s32.totalorder %s24, %s27
      %p36 = scmp.eq.s32.totalorder %s19, 2
      %p37 = por %p35, %p36
      %p38 = scmp.ne.s32.totalorder %s27, %s28
      %p39 = scmp.eq.s32.totalorder %s19, 0
      %p40 = por %p38, %p39
      %p41 = scmp.ne.s32.totalorder %s27, %s28
      %p42 = scmp.eq.s32.totalorder %s20, 2
      %p43 = por %p41, %p42
      %p45 = scmp.ne.s32.totalorder %s28, %s44
      %p46 = scmp.eq.s32.totalorder %s20, 0
      %p47 = por %p45, %p46
      %s48 = ssub.s32 %s14, %s21
      %p49 = scmp.eq.s32.totalorder %s48, 0
      %s51 = sadd.s32 %s50, 1
      %s52 = scalar_select %p49, %s50, %s51
      %p55 = pneg %p49
      %p56 = scmp.eq.s32.totalorder %s14, 2
      %p57 = por %p55, %p56
      %p58 = scmp.ne.s32.totalorder %s50, %s53
      %p59 = scmp.eq.s32.totalorder %s14, 0
      %p60 = por %p58, %p59
      %p61 = scmp.ne.s32.totalorder %s50, %s53
      %p62 = scmp.eq.s32.totalorder %s19, 2
      %p63 = por %p61, %p62
      %p64 = scmp.ne.s32.totalorder %s53, %s54
      %p65 = scmp.eq.s32.totalorder %s19, 0
      %p66 = por %p64, %p65
      %p67 = scmp.ne.s32.totalorder %s53, %s54
      %p68 = scmp.eq.s32.totalorder %s20, 2
      %p69 = por %p67, %p68
      %p71 = scmp.ne.s32.totalorder %s54, %s70
      %p72 = scmp.eq.s32.totalorder %s20, 0
      %p73 = por %p71, %p72
      %s75 = sadd.s32 %s74, 1
      %p78 = scmp.eq.s32.totalorder %s14, 2
      %p79 = scmp.ne.s32.totalorder %s74, %s76
      %p80 = scmp.eq.s32.totalorder %s14, 0
      %p81 = por %p79, %p80
      %p82 = scmp.ne.s32.totalorder %s74, %s76
      %p83 = scmp.eq.s32.totalorder %s19, 2
      %p84 = por %p82, %p83
      %p85 = scmp.ne.s32.totalorder %s76, %s77
      %p86 = scmp.eq.s32.totalorder %s19, 0
      %p87 = por %p85, %p86
      %p88 = scmp.ne.s32.totalorder %s76, %s77
      %p89 = scmp.eq.s32.totalorder %s20, 2
      %p90 = por %p88, %p89
      %p92 = scmp.ne.s32.totalorder %s77, %s91
      %p93 = scmp.eq.s32.totalorder %s20, 0
      %p94 = por %p92, %p93
      %s96 = sadd.s32 %s95, 1
      %p99 = scmp.eq.s32.totalorder %s14, 2
      %p100 = scmp.ne.s32.totalorder %s95, %s97
      %p101 = scmp.eq.s32.totalorder %s14, 0
      %p102 = por %p100, %p101
      %p103 = scmp.ne.s32.totalorder %s95, %s97
      %p104 = scmp.eq.s32.totalorder %s19, 2
      %p105 = por %p103, %p104
      %p106 = scmp.ne.s32.totalorder %s97, %s98
      %p107 = scmp.eq.s32.totalorder %s19, 0
      %p108 = por %p106, %p107
      %p109 = scmp.ne.s32.totalorder %s97, %s98
      %p110 = scmp.eq.s32.totalorder %s20, 2
      %p111 = por %p109, %p110
      %p113 = scmp.ne.s32.totalorder %s98, %s112
      %p114 = scmp.eq.s32.totalorder %s20, 0
      %p115 = por %p113, %p114
      %s117 = sadd.s32 %s116, 1
      %p120 = scmp.eq.s32.totalorder %s14, 2
      %p121 = scmp.ne.s32.totalorder %s116, %s118
      %p122 = scmp.eq.s32.totalorder %s14, 0
      %p123 = por %p121, %p122
      %p124 = scmp.ne.s32.totalorder %s116, %s118
      %p125 = scmp.eq.s32.totalorder %s19, 2
      %p126 = por %p124, %p125
      %p127 = scmp.ne.s32.totalorder %s118, %s119
      %p128 = scmp.eq.s32.totalorder %s19, 0
      %p129 = por %p127, %p128
      %p130 = scmp.ne.s32.totalorder %s118, %s119
      %p131 = scmp.eq.s32.totalorder %s20, 2
      %p132 = por %p130, %p131
      %p134 = scmp.ne.s32.totalorder %s119, %s133
      %p135 = scmp.eq.s32.totalorder %s20, 0
      %p136 = por %p134, %p135
      %s138 = sadd.s32 %s137, 1
      %p141 = scmp.eq.s32.totalorder %s14, 2
      %p142 = scmp.ne.s32.totalorder %s137, %s139
      %p143 = scmp.eq.s32.totalorder %s14, 0
      %p144 = por %p142, %p143
      %p145 = scmp.ne.s32.totalorder %s137, %s139
      %p146 = scmp.eq.s32.totalorder %s19, 2
      %p147 = por %p145, %p146
      %p148 = scmp.ne.s32.totalorder %s139, %s140
      %p149 = scmp.eq.s32.totalorder %s19, 0
      %p150 = por %p148, %p149
      %p151 = scmp.ne.s32.totalorder %s139, %s140
      %p152 = scmp.eq.s32.totalorder %s20, 2
      %p153 = por %p151, %p152
      %p155 = scmp.ne.s32.totalorder %s140, %s154
      %p156 = scmp.eq.s32.totalorder %s20, 0
      %p157 = por %p155, %p156
      %s159 = sadd.s32 %s158, 1
      %p162 = scmp.eq.s32.totalorder %s14, 2
      %p163 = scmp.ne.s32.totalorder %s158, %s160
      %p164 = scmp.eq.s32.totalorder %s14, 0
      %p165 = por %p163, %p164
      %p166 = scmp.ne.s32.totalorder %s158, %s160
      %p167 = scmp.eq.s32.totalorder %s19, 2
      %p168 = por %p166, %p167
      %p169 = scmp.ne.s32.totalorder %s160, %s161
      %p170 = scmp.eq.s32.totalorder %s19, 0
      %p171 = por %p169, %p170
      %p172 = scmp.ne.s32.totalorder %s160, %s161
      %p173 = scmp.eq.s32.totalorder %s20, 2
      %p174 = por %p172, %p173
      %p176 = scmp.ne.s32.totalorder %s161, %s175
      %p177 = scmp.eq.s32.totalorder %s20, 0
      %p178 = por %p176, %p177
      %s180 = sadd.s32 %s179, 1
      %p183 = scmp.eq.s32.totalorder %s14, 2
      %p184 = scmp.ne.s32.totalorder %s179, %s181
      %p185 = scmp.eq.s32.totalorder %s14, 0
      %p186 = por %p184, %p185
      %p187 = scmp.ne.s32.totalorder %s179, %s181
      %p188 = scmp.eq.s32.totalorder %s19, 2
      %p189 = por %p187, %p188
      %p190 = scmp.ne.s32.totalorder %s181, %s182
      %p191 = scmp.eq.s32.totalorder %s19, 0
      %p192 = por %p190, %p191
      %p193 = scmp.ne.s32.totalorder %s181, %s182
      %p194 = scmp.eq.s32.totalorder %s20, 2
      %p195 = por %p193, %p194
      %p197 = scmp.ne.s32.totalorder %s182, %s196
      %p198 = scmp.eq.s32.totalorder %s20, 0
      %p199 = por %p197, %p198
      %p200 = scmp.le.s32.totalorder 1, %s14
      %p201 = scmp.lt.s32.totalorder %s14, 4
      %p202 = pnand %p200, %p201
      %p203 = pneg %p202
      // Predicated region
      $region9: #{surrogate_forward.1} parent=5 // pred_check
        _
      $region10: #{surrogate_forward.1} parent=5 // pred_check_branch
        %205 = sbr.rel (%p202) target = $region12
      $region11: #{surrogate_forward.1} parent=5 // pred_region
        %s206 = ssub.s32 %s14, 1
        // Predicated region
        $region13: #{surrogate_forward.1} parent=11 // pred_check
          %p207 = pneg %p87
        $region14: #{surrogate_forward.1} parent=11 // pred_check_branch
          %209 = sbr.rel (%p207) target = $region16
        $region15: #{surrogate_forward.1} parent=11 // pred_region
          _
        $region16: #{surrogate_forward.1} parent=11 // pred_fallthru
          _
        // Predicated region
        $region17: #{surrogate_forward.1} parent=11 // pred_check
          %p210 = pneg %p108
        $region18: #{surrogate_forward.1} parent=11 // pred_check_branch
          %212 = sbr.rel (%p210) target = $region20
        $region19: #{surrogate_forward.1} parent=11 // pred_region
          _
        $region20: #{surrogate_forward.1} parent=11 // pred_fallthru
          _
        // Predicated region
        $region21: #{surrogate_forward.1} parent=11 // pred_check
          %p213 = pneg %p129
        $region22: #{surrogate_forward.1} parent=11 // pred_check_branch
          %215 = sbr.rel (%p213) target = $region24
        $region23: #{surrogate_forward.1} parent=11 // pred_region
          _
        $region24: #{surrogate_forward.1} parent=11 // pred_fallthru
          _
        // Predicated region
        $region25: #{surrogate_forward.1} parent=11 // pred_check
          %p216 = pneg %p150
        $region26: #{surrogate_forward.1} parent=11 // pred_check_branch
          %218 = sbr.rel (%p216) target = $region28
        $region27: #{surrogate_forward.1} parent=11 // pred_region
          _
        $region28: #{surrogate_forward.1} parent=11 // pred_fallthru
          _
        // Predicated region
        $region29: #{surrogate_forward.1} parent=11 // pred_check
          %p219 = pneg %p171
        $region30: #{surrogate_forward.1} parent=11 // pred_check_branch
          %221 = sbr.rel (%p219) target = $region32
        $region31: #{surrogate_forward.1} parent=11 // pred_region
          _
        $region32: #{surrogate_forward.1} parent=11 // pred_fallthru
          _
      $region12: #{surrogate_forward.1} parent=5 // pred_fallthru
        _
      %p222 = scmp.lt.s32.totalorder %s14, 3
      // Predicated region
      $region33: #{surrogate_forward.1} parent=5 // pred_check
        %p223 = pneg %p222
      $region34: #{surrogate_forward.1} parent=5 // pred_check_branch
        %225 = sbr.rel (%p223) target = $region36
      $region35: #{surrogate_forward.1} parent=5 // pred_region
        // Predicated region
        $region37: #{surrogate_forward.1} parent=35 // pred_check
          %p226 = pneg %p34
        $region38: #{surrogate_forward.1} parent=35 // pred_check_branch
          %228 = sbr.rel (%p226) target = $region40
        $region39: #{surrogate_forward.1} parent=35 // pred_region
          %s229 = smul.u32 4, %s14
          %p230 = scmp.lt.s32.totalorder %s229, 11
          %s231 = scalar_select %p230, %s229, 11
          %s232 = scalar_lea.vmem %s0, %s231
          %s233 = smul.u32 4, %s14
        $region40: #{surrogate_forward.1} parent=35 // pred_fallthru
          _
        // Predicated region
        $region41: #{surrogate_forward.1} parent=35 // pred_check
          %p234 = pneg %p60
        $region42: #{surrogate_forward.1} parent=35 // pred_check_branch
          %236 = sbr.rel (%p234) target = $region44
        $region43: #{surrogate_forward.1} parent=35 // pred_region
          %s237 = smul.u32 64, %s14
          %p238 = scmp.lt.s32.totalorder %s237, 191
          %s239 = scalar_select %p238, %s237, 191
          %s240 = smul.addr %s239, 4
          %s241 = scalar_lea.vmem %s1, %s240
          %s242 = smul.u32 64, %s14
        $region44: #{surrogate_forward.1} parent=35 // pred_fallthru
          _
      $region36: #{surrogate_forward.1} parent=5 // pred_fallthru
        _
      %p243 = scmp.le.s32.totalorder 1, %s14
      %p244 = scmp.lt.s32.totalorder %s14, 4
      %p245 = pnand %p243, %p244
      %p246 = pneg %p245
      // Predicated region
      $region45: #{surrogate_forward.1} parent=5 // pred_check
        _
      $region46: #{surrogate_forward.1} parent=5 // pred_check_branch
        %248 = sbr.rel (%p245) target = $region48
      $region47: #{surrogate_forward.1} parent=5 // pred_region
        %s249 = ssub.s32 %s14, 1
        %s250 = smul.u32 4, %s19
        %p251 = scmp.lt.s32.totalorder %s250, 11
        %s252 = scalar_select %p251, %s250, 11
        %s253 = scalar_lea.vmem %s0, %s252
        %p254 = pneg %p40
        %p255 = pneg %p37
        %s256 = smul.u32 64, %s19
        %p257 = scmp.lt.s32.totalorder %s256, 191
        %s258 = scalar_select %p257, %s256, 191
        %s259 = smul.addr %s258, 4
        %s260 = scalar_lea.vmem %s1, %s259
        %p261 = pneg %p66
        %p262 = pneg %p63
        %p263 = pneg %p87
        %p264 = pneg %p84
        %p265 = pneg %p108
        %p266 = pneg %p105
        %p267 = pneg %p129
        %p268 = pneg %p126
        %p269 = pneg %p150
        %p270 = pneg %p147
        %p271 = pneg %p171
        %p272 = pneg %p168
        %p273 = pneg %p192
        %p274 = pneg %p189
        %s275 = smul.u32 4, %s19
        %p276 = scmp.lt.s32.totalorder %s275, 11
        %s277 = scalar_select %p276, %s275, 11
        %s278 = scalar_lea.vmem %s0, %s277
        %s279 = smul.u32 4, %s19
        %s280 = smul.u32 64, %s19
        %p281 = scmp.lt.s32.totalorder %s280, 191
        %s282 = scalar_select %p281, %s280, 191
        %s283 = smul.addr %s282, 4
        %s284 = scalar_lea.vmem %s1, %s283
        %s285 = smul.u32 64, %s19
        %p287 = scmp.eq.s32.totalorder %s19, 0
        // Predicated region
        $region49: #{surrogate_forward.1} parent=47 // pred_check
          %p288 = pneg %p287
        $region50: #{surrogate_forward.1} parent=47 // pred_check_branch
          %290 = sbr.rel (%p288) target = $region52
        $region51: #{surrogate_forward.1} parent=47 // pred_region
          %291 = vst [vmem:[#allocation2] sm:$0x3] 0.0
        $region52: #{surrogate_forward.1} parent=47 // pred_fallthru
          _
        %v292 = vld [vmem:[#allocation2] sm:$0x3]
        %v293 = vld [vmem:[%s278] sm:$0xf]
        %v294 = vld [vmem:[%s284] sm:$0xf]
        %v295 = vld [vmem:[%s284 + $0x4] sm:$0xf]
        %v296 = vld [vmem:[%s284 + $0x8] sm:$0xf]
        %v297 = vld [vmem:[%s284 + $0xc] sm:$0xf]
        %v298 = vld [vmem:[%s284 + $0x10] sm:$0xf]
        %v299 = vld [vmem:[%s284 + $0x14] sm:$0xf]
        %v300 = vld [vmem:[%s284 + $0x18] sm:$0xf]
        %v301 = vld [vmem:[%s284 + $0x1c] sm:$0xf]
        %v302 = vld [vmem:[%s284 + $0x20] sm:$0xf]
        %v303 = vld [vmem:[%s284 + $0x24] sm:$0xf]
        %v304 = vld [vmem:[%s284 + $0x28] sm:$0xf]
        %v305 = vld [vmem:[%s284 + $0x2c] sm:$0xf]
        %v306 = vld [vmem:[%s284 + $0x30] sm:$0xf]
        %v307 = vld [vmem:[%s284 + $0x34] sm:$0xf]
        %v308 = vld [vmem:[%s284 + $0x38] sm:$0xf]
        %v309 = vld [vmem:[%s284 + $0x3c] sm:$0xf]
        %v310 = vld [vmem:[%s284 + $0x40] sm:$0xf]
        %v311 = vld [vmem:[%s284 + $0x44] sm:$0xf]
        %v312 = vld [vmem:[%s284 + $0x48] sm:$0xf]
        %v313 = vld [vmem:[%s284 + $0x4c] sm:$0xf]
        %v314 = vld [vmem:[%s284 + $0x50] sm:$0xf]
        %v315 = vld [vmem:[%s284 + $0x54] sm:$0xf]
        %v316 = vld [vmem:[%s284 + $0x58] sm:$0xf]
        %v317 = vld [vmem:[%s284 + $0x5c] sm:$0xf]
        %v318 = vld [vmem:[%s284 + $0x60] sm:$0xf]
        %v319 = vld [vmem:[%s284 + $0x64] sm:$0xf]
        %v320 = vld [vmem:[%s284 + $0x68] sm:$0xf]
        %v321 = vld [vmem:[%s284 + $0x6c] sm:$0xf]
        %v322 = vld [vmem:[%s284 + $0x70] sm:$0xf]
        %v323 = vld [vmem:[%s284 + $0x74] sm:$0xf]
        %v324 = vld [vmem:[%s284 + $0x78] sm:$0xf]
        %v325 = vld [vmem:[%s284 + $0x7c] sm:$0xf]
        %v326 = vld [vmem:[%s284 + $0x80] sm:$0xf]
        %v327 = vld [vmem:[%s284 + $0x84] sm:$0xf]
        %v328 = vld [vmem:[%s284 + $0x88] sm:$0xf]
        %v329 = vld [vmem:[%s284 + $0x8c] sm:$0xf]
        %v330 = vld [vmem:[%s284 + $0x90] sm:$0xf]
        %v331 = vld [vmem:[%s284 + $0x94] sm:$0xf]
        %v332 = vld [vmem:[%s284 + $0x98] sm:$0xf]
        %v333 = vld [vmem:[%s284 + $0x9c] sm:$0xf]
        %v334 = vld [vmem:[%s284 + $0xa0] sm:$0xf]
        %v335 = vld [vmem:[%s284 + $0xa4] sm:$0xf]
        %v336 = vld [vmem:[%s284 + $0xa8] sm:$0xf]
        %v337 = vld [vmem:[%s284 + $0xac] sm:$0xf]
        %v338 = vld [vmem:[%s284 + $0xb0] sm:$0xf]
        %v339 = vld [vmem:[%s284 + $0xb4] sm:$0xf]
        %v340 = vld [vmem:[%s284 + $0xb8] sm:$0xf]
        %v341 = vld [vmem:[%s284 + $0xbc] sm:$0xf]
        %v342 = vld [vmem:[%s284 + $0xc0] sm:$0xf]
        %v343 = vld [vmem:[%s284 + $0xc4] sm:$0xf]
        %v344 = vld [vmem:[%s284 + $0xc8] sm:$0xf]
        %v345 = vld [vmem:[%s284 + $0xcc] sm:$0xf]
        %v346 = vld [vmem:[%s284 + $0xd0] sm:$0xf]
        %v347 = vld [vmem:[%s284 + $0xd4] sm:$0xf]
        %v348 = vld [vmem:[%s284 + $0xd8] sm:$0xf]
        %v349 = vld [vmem:[%s284 + $0xdc] sm:$0xf]
        %v350 = vld [vmem:[%s284 + $0xe0] sm:$0xf]
        %v351 = vld [vmem:[%s284 + $0xe4] sm:$0xf]
        %v352 = vld [vmem:[%s284 + $0xe8] sm:$0xf]
        %v353 = vld [vmem:[%s284 + $0xec] sm:$0xf]
        %v354 = vld [vmem:[%s284 + $0xf0] sm:$0xf]
        %v355 = vld [vmem:[%s284 + $0xf4] sm:$0xf]
        %v356 = vld [vmem:[%s284 + $0xf8] sm:$0xf]
        %v357 = vld [vmem:[%s284 + $0xfc] sm:$0xf]
        %v360 = vunpack.c.l.s4 1966171168
        %v361 = vunpack.c.0.s8 %v360
        %v362 = vlaneseq
        %v363 = vshrl.u32 %v362, 7
        %v364 = vsub.s32 %v361, %v363
        %v365 = vrot.slane %v293, %v364
        %v366 = vcombine.high %v365, %v365
        %v368 = vunpack.c.l.s4 1966171168
        %v369 = vunpack.c.0.s8 %v368
        %v370 = vlaneseq
        %v371 = vshrl.u32 %v370, 7
        %v372 = vsub.s32 %v369, %v371
        %v373 = vrot.slane %v365, %v372
        %v375 = vunpack.c.l.s4 1966171168
        %v376 = vunpack.c.0.s8 %v375
        %v377 = vlaneseq
        %v378 = vshrl.u32 %v377, 7
        %v379 = vsub.s32 %v376, %v378
        %v380 = vrot.slane %v366, %v379
        %v381 = vcombine.high %v373, %v373
        %v382 = vcombine.high %v380, %v380
        %v451 = vunpack.c.l.b16 %v294
        %v452 = vunpack.c.l.b16 %v295
        %v453 = vunpack.c.l.b16 %v296
        %v454 = vunpack.c.l.b16 %v297
        %v455 = vunpack.c.l.b16 %v298
        %v456 = vunpack.c.l.b16 %v299
        %v457 = vunpack.c.l.b16 %v300
        %v458 = vunpack.c.l.b16 %v301
        %v459 = vunpack.c.l.b16 %v302
        %v460 = vunpack.c.l.b16 %v303
        %v461 = vunpack.c.l.b16 %v304
        %v462 = vunpack.c.l.b16 %v305
        %v463 = vunpack.c.l.b16 %v306
        %v464 = vunpack.c.l.b16 %v307
        %v465 = vunpack.c.l.b16 %v308
        %v466 = vunpack.c.l.b16 %v309
        %v467 = vunpack.c.l.b16 %v310
        %v468 = vunpack.c.l.b16 %v311
        %v469 = vunpack.c.l.b16 %v312
        %v470 = vunpack.c.l.b16 %v313
        %v471 = vunpack.c.l.b16 %v314
        %v472 = vunpack.c.l.b16 %v315
        %v473 = vunpack.c.l.b16 %v316
        %v474 = vunpack.c.l.b16 %v317
        %v475 = vunpack.c.l.b16 %v318
        %v476 = vunpack.c.l.b16 %v319
        %v477 = vunpack.c.l.b16 %v320
        %v478 = vunpack.c.l.b16 %v321
        %v479 = vunpack.c.l.b16 %v322
        %v480 = vunpack.c.l.b16 %v323
        %v481 = vunpack.c.l.b16 %v324
        %v482 = vunpack.c.l.b16 %v325
        %v483 = vunpack.c.l.b16 %v326
        %v484 = vunpack.c.l.b16 %v327
        %v485 = vunpack.c.l.b16 %v328
        %v486 = vunpack.c.l.b16 %v329
        %v487 = vunpack.c.l.b16 %v330
        %v488 = vunpack.c.l.b16 %v331
        %v489 = vunpack.c.l.b16 %v332
        %v490 = vunpack.c.l.b16 %v333
        %v491 = vunpack.c.l.b16 %v334
        %v492 = vunpack.c.l.b16 %v335
        %v493 = vunpack.c.l.b16 %v336
        %v494 = vunpack.c.l.b16 %v337
        %v495 = vunpack.c.l.b16 %v338
        %v496 = vunpack.c.l.b16 %v339
        %v497 = vunpack.c.l.b16 %v340
        %v498 = vunpack.c.l.b16 %v341
        %v499 = vunpack.c.l.b16 %v342
        %v500 = vunpack.c.l.b16 %v343
        %v501 = vunpack.c.l.b16 %v344
        %v502 = vunpack.c.l.b16 %v345
        %v503 = vunpack.c.l.b16 %v346
        %v504 = vunpack.c.l.b16 %v347
        %v505 = vunpack.c.l.b16 %v348
        %v506 = vunpack.c.l.b16 %v349
        %v507 = vunpack.c.l.b16 %v350
        %v508 = vunpack.c.l.b16 %v351
        %v509 = vunpack.c.l.b16 %v352
        %v510 = vunpack.c.l.b16 %v353
        %v511 = vunpack.c.l.b16 %v354
        %v512 = vunpack.c.l.b16 %v355
        %v513 = vunpack.c.l.b16 %v356
        %v514 = vunpack.c.l.b16 %v357
        %v515 = vpack.c.b16 %v452, %v451
        %v516 = vpack.c.b16 %v454, %v453
        %v517 = vpack.c.b16 %v456, %v455
        %v518 = vpack.c.b16 %v458, %v457
        %v519 = vpack.c.b16 %v460, %v459
        %v520 = vpack.c.b16 %v462, %v461
        %v521 = vpack.c.b16 %v464, %v463
        %v522 = vpack.c.b16 %v466, %v465
        %v523 = vpack.c.b16 %v468, %v467
        %v524 = vpack.c.b16 %v470, %v469
        %v525 = vpack.c.b16 %v472, %v471
        %v526 = vpack.c.b16 %v474, %v473
        %v527 = vpack.c.b16 %v476, %v475
        %v528 = vpack.c.b16 %v478, %v477
        %v529 = vpack.c.b16 %v480, %v479
        %v530 = vpack.c.b16 %v482, %v481
        %v531 = vpack.c.b16 %v484, %v483
        %v532 = vpack.c.b16 %v486, %v485
        %v533 = vpack.c.b16 %v488, %v487
        %v534 = vpack.c.b16 %v490, %v489
        %v535 = vpack.c.b16 %v492, %v491
        %v536 = vpack.c.b16 %v494, %v493
        %v537 = vpack.c.b16 %v496, %v495
        %v538 = vpack.c.b16 %v498, %v497
        %v539 = vpack.c.b16 %v500, %v499
        %v540 = vpack.c.b16 %v502, %v501
        %v541 = vpack.c.b16 %v504, %v503
        %v542 = vpack.c.b16 %v506, %v505
        %v543 = vpack.c.b16 %v508, %v507
        %v544 = vpack.c.b16 %v510, %v509
        %v545 = vpack.c.b16 %v512, %v511
        %v546 = vpack.c.b16 %v514, %v513
        %579 = vmatprep.subr.bf16.mxu0 0
        %580 = vmatpush1.bf16.msra.mxu0 %v515
        %581 = vmatprep.subr.bf16.mxu0 0
        %582 = vmatpush1.bf16.msra.mxu0 %v516
        %583 = vmatprep.subr.bf16.mxu0 0
        %584 = vmatpush1.bf16.msra.mxu0 %v517
        %585 = vmatprep.subr.bf16.mxu0 0
        %586 = vmatpush1.bf16.msra.mxu0 %v518
        %587 = vmatprep.subr.bf16.mxu0 0
        %588 = vmatpush1.bf16.msra.mxu0 %v519
        %589 = vmatprep.subr.bf16.mxu0 0
        %590 = vmatpush1.bf16.msra.mxu0 %v520
        %591 = vmatprep.subr.bf16.mxu0 0
        %592 = vmatpush1.bf16.msra.mxu0 %v521
        %593 = vmatprep.subr.bf16.mxu0 0
        %594 = vmatpush1.bf16.msra.mxu0 %v522
        %595 = vmatprep.subr.bf16.mxu0 0
        %596 = vmatpush1.bf16.msra.mxu0 %v523
        %597 = vmatprep.subr.bf16.mxu0 0
        %598 = vmatpush1.bf16.msra.mxu0 %v524
        %599 = vmatprep.subr.bf16.mxu0 0
        %600 = vmatpush1.bf16.msra.mxu0 %v525
        %601 = vmatprep.subr.bf16.mxu0 0
        %602 = vmatpush1.bf16.msra.mxu0 %v526
        %603 = vmatprep.subr.bf16.mxu0 0
        %604 = vmatpush1.bf16.msra.mxu0 %v527
        %605 = vmatprep.subr.bf16.mxu0 0
        %606 = vmatpush1.bf16.msra.mxu0 %v528
        %607 = vmatprep.subr.bf16.mxu0 0
        %608 = vmatpush1.bf16.msra.mxu0 %v529
        %609 = vmatprep.subr.bf16.mxu0 0
        %610 = vmatpush1.bf16.msra.mxu0 %v530
        %611 = vmatprep.mubr.bf16.mxu0 %v380
        %612 = vmatmul.mubr.bf16.gmra.mrb[0].mxu0 %v373
        %v613 = vpop.f32.mrb[0].mxu0
        %v614 = vadd.f32 0.0, %v613
        %v615 = vpop.f32.mrb[0].mxu0
        %v616 = vpop.f32.mrb[0].mxu0
        %v617 = vpop.f32.mrb[0].mxu0
        %618 = vdwg.mxu0
        %619 = vmatprep.subr.bf16.mxu0 0
        %620 = vmatpush1.bf16.msra.mxu0 %v531
        %621 = vmatprep.subr.bf16.mxu0 0
        %622 = vmatpush1.bf16.msra.mxu0 %v532
        %623 = vmatprep.subr.bf16.mxu0 0
        %624 = vmatpush1.bf16.msra.mxu0 %v533
        %625 = vmatprep.subr.bf16.mxu0 0
        %626 = vmatpush1.bf16.msra.mxu0 %v534
        %627 = vmatprep.subr.bf16.mxu0 0
        %628 = vmatpush1.bf16.msra.mxu0 %v535
        %629 = vmatprep.subr.bf16.mxu0 0
        %630 = vmatpush1.bf16.msra.mxu0 %v536
        %631 = vmatprep.subr.bf16.mxu0 0
        %632 = vmatpush1.bf16.msra.mxu0 %v537
        %633 = vmatprep.subr.bf16.mxu0 0
        %634 = vmatpush1.bf16.msra.mxu0 %v538
        %635 = vmatprep.subr.bf16.mxu0 0
        %636 = vmatpush1.bf16.msra.mxu0 %v539
        %637 = vmatprep.subr.bf16.mxu0 0
        %638 = vmatpush1.bf16.msra.mxu0 %v540
        %639 = vmatprep.subr.bf16.mxu0 0
        %640 = vmatpush1.bf16.msra.mxu0 %v541
        %641 = vmatprep.subr.bf16.mxu0 0
        %642 = vmatpush1.bf16.msra.mxu0 %v542
        %643 = vmatprep.subr.bf16.mxu0 0
        %644 = vmatpush1.bf16.msra.mxu0 %v543
        %645 = vmatprep.subr.bf16.mxu0 0
        %646 = vmatpush1.bf16.msra.mxu0 %v544
        %647 = vmatprep.subr.bf16.mxu0 0
        %648 = vmatpush1.bf16.msra.mxu0 %v545
        %649 = vmatprep.subr.bf16.mxu0 0
        %650 = vmatpush1.bf16.msra.mxu0 %v546
        %651 = vmatprep.mubr.bf16.mxu0 %v382
        %652 = vmatmul.mubr.bf16.gmra.mrb[0].mxu0 %v381
        %v653 = vpop.f32.mrb[0].mxu0
        %v654 = vadd.f32 %v614, %v653
        %v655 = vpop.f32.mrb[0].mxu0
        %v656 = vpop.f32.mrb[0].mxu0
        %v657 = vpop.f32.mrb[0].mxu0
        %658 = vdwg.mxu0
        %v659 = vadd.f32 %v292, %v654
        %660 = vst [vmem:[#allocation2] sm:$0x3] %v659
        %p661 = scmp.eq.s32.totalorder %s19, 2
        // Predicated region
        $region53: #{surrogate_forward.1} parent=47 // pred_check
          %p662 = pneg %p661
        $region54: #{surrogate_forward.1} parent=47 // pred_check_branch
          %664 = sbr.rel (%p662) target = $region56
        $region55: #{surrogate_forward.1} parent=47 // pred_region
          %v665 = vld [vmem:[#allocation2] sm:$0x3]
          %v666 = vld [vmem:[%s2] sm:$0x1]
          %v668 = vlaneseq
          %v669 = vshrl.u32 %v668, 7
          %v670 = vsub.s32 0, %v669
          %v671 = vrot.slane %v666, %v670
          %v673 = vadd.f32 %v665, %v671
          %v674 = vmax.f32 %v673, 0.0
          %v675 = vpack.c.bf16 %v674, %v674
          %v676 = vld [vmem:[%s3] sm:$0xf]
          %v677 = vld [vmem:[%s3 + $0x4] sm:$0xf]
          %v678 = vld [vmem:[%s3 + $0x8] sm:$0xf]
          %v679 = vld [vmem:[%s3 + $0xc] sm:$0xf]
          %v680 = vld [vmem:[%s3 + $0x10] sm:$0xf]
          %v681 = vld [vmem:[%s3 + $0x14] sm:$0xf]
          %v682 = vld [vmem:[%s3 + $0x18] sm:$0xf]
          %v683 = vld [vmem:[%s3 + $0x1c] sm:$0xf]
          %v684 = vld [vmem:[%s3 + $0x20] sm:$0xf]
          %v685 = vld [vmem:[%s3 + $0x24] sm:$0xf]
          %v686 = vld [vmem:[%s3 + $0x28] sm:$0xf]
          %v687 = vld [vmem:[%s3 + $0x2c] sm:$0xf]
          %v688 = vld [vmem:[%s3 + $0x30] sm:$0xf]
          %v689 = vld [vmem:[%s3 + $0x34] sm:$0xf]
          %v690 = vld [vmem:[%s3 + $0x38] sm:$0xf]
          %v691 = vld [vmem:[%s3 + $0x3c] sm:$0xf]
          %v692 = vld [vmem:[%s4] sm:$0x1]
          %v694 = vlaneseq
          %v695 = vshrl.u32 %v694, 7
          %v696 = vsub.s32 0, %v695
          %v697 = vrot.slane %v692, %v696
          %v715 = vunpack.c.l.b16 %v676
          %v716 = vunpack.c.l.b16 %v677
          %v717 = vunpack.c.l.b16 %v678
          %v718 = vunpack.c.l.b16 %v679
          %v719 = vunpack.c.l.b16 %v680
          %v720 = vunpack.c.l.b16 %v681
          %v721 = vunpack.c.l.b16 %v682
          %v722 = vunpack.c.l.b16 %v683
          %v723 = vunpack.c.l.b16 %v684
          %v724 = vunpack.c.l.b16 %v685
          %v725 = vunpack.c.l.b16 %v686
          %v726 = vunpack.c.l.b16 %v687
          %v727 = vunpack.c.l.b16 %v688
          %v728 = vunpack.c.l.b16 %v689
          %v729 = vunpack.c.l.b16 %v690
          %v730 = vunpack.c.l.b16 %v691
          %v731 = vpack.c.b16 %v716, %v715
          %v732 = vpack.c.b16 %v718, %v717
          %v733 = vpack.c.b16 %v720, %v719
          %v734 = vpack.c.b16 %v722, %v721
          %v735 = vpack.c.b16 %v724, %v723
          %v736 = vpack.c.b16 %v726, %v725
          %v737 = vpack.c.b16 %v728, %v727
          %v738 = vpack.c.b16 %v730, %v729
          %747 = vmatprep.subr.bf16.mxu0 0
          %748 = vmatpush1.bf16.msra.mxu0 %v731
          %749 = vmatprep.subr.bf16.mxu0 0
          %750 = vmatpush1.bf16.msra.mxu0 %v732
          %751 = vmatprep.subr.bf16.mxu0 0
          %752 = vmatpush1.bf16.msra.mxu0 %v733
          %753 = vmatprep.subr.bf16.mxu0 0
          %754 = vmatpush1.bf16.msra.mxu0 %v734
          %755 = vmatprep.subr.bf16.mxu0 0
          %756 = vmatpush1.bf16.msra.mxu0 %v735
          %757 = vmatprep.subr.bf16.mxu0 0
          %758 = vmatpush1.bf16.msra.mxu0 %v736
          %759 = vmatprep.subr.bf16.mxu0 0
          %760 = vmatpush1.bf16.msra.mxu0 %v737
          %761 = vmatprep.subr.bf16.mxu0 0
          %762 = vmatpush1.bf16.msra.mxu0 %v738
          %763 = vmatprep.subr.bf16.mxu0 0
          %764 = vmatpush1.bf16.msra.mxu0 0
          %765 = vmatprep.subr.bf16.mxu0 0
          %766 = vmatpush1.bf16.msra.mxu0 0
          %767 = vmatprep.subr.bf16.mxu0 0
          %768 = vmatpush1.bf16.msra.mxu0 0
          %769 = vmatprep.subr.bf16.mxu0 0
          %770 = vmatpush1.bf16.msra.mxu0 0
          %771 = vmatprep.subr.bf16.mxu0 0
          %772 = vmatpush1.bf16.msra.mxu0 0
          %773 = vmatprep.subr.bf16.mxu0 0
          %774 = vmatpush1.bf16.msra.mxu0 0
          %775 = vmatprep.subr.bf16.mxu0 0
          %776 = vmatpush1.bf16.msra.mxu0 0
          %777 = vmatprep.subr.bf16.mxu0 0
          %778 = vmatpush1.bf16.msra.mxu0 0
          %779 = vmatprep.mubr.bf16.mxu0 0
          %780 = vmatmul.mubr.bf16.gmra.mrb[0].mxu0 %v675
          %v781 = vpop.f32.mrb[0].mxu0
          %v782 = vadd.f32 %v697, %v781
          %v783 = vpop.f32.mrb[0].mxu0
          %v784 = vpop.f32.mrb[0].mxu0
          %v785 = vpop.f32.mrb[0].mxu0
          %786 = vdwg.mxu0
          %v787 = vmax.f32 %v782, 0.0
          %v788 = vpack.c.bf16 %v787, %v787
          %v789 = vld [vmem:[%s5] sm:$0xf]
          %v790 = vld [vmem:[%s5 + $0x4] sm:$0xf]
          %v791 = vld [vmem:[%s5 + $0x8] sm:$0xf]
          %v792 = vld [vmem:[%s5 + $0xc] sm:$0xf]
          %v793 = vld [vmem:[%s5 + $0x10] sm:$0xf]
          %v794 = vld [vmem:[%s5 + $0x14] sm:$0xf]
          %v795 = vld [vmem:[%s5 + $0x18] sm:$0xf]
          %v796 = vld [vmem:[%s5 + $0x1c] sm:$0xf]
          %v797 = vld [vmem:[%s5 + $0x20] sm:$0xf]
          %v798 = vld [vmem:[%s5 + $0x24] sm:$0xf]
          %v799 = vld [vmem:[%s5 + $0x28] sm:$0xf]
          %v800 = vld [vmem:[%s5 + $0x2c] sm:$0xf]
          %v801 = vld [vmem:[%s5 + $0x30] sm:$0xf]
          %v802 = vld [vmem:[%s5 + $0x34] sm:$0xf]
          %v803 = vld [vmem:[%s5 + $0x38] sm:$0xf]
          %v804 = vld [vmem:[%s5 + $0x3c] sm:$0xf]
          %v805 = vld [vmem:[%s6] sm:$0x1]
          %v807 = vlaneseq
          %v808 = vshrl.u32 %v807, 7
          %v809 = vsub.s32 0, %v808
          %v810 = vrot.slane %v805, %v809
          %v828 = vunpack.c.l.b16 %v789
          %v829 = vunpack.c.l.b16 %v790
          %v830 = vunpack.c.l.b16 %v791
          %v831 = vunpack.c.l.b16 %v792
          %v832 = vunpack.c.l.b16 %v793
          %v833 = vunpack.c.l.b16 %v794
          %v834 = vunpack.c.l.b16 %v795
          %v835 = vunpack.c.l.b16 %v796
          %v836 = vunpack.c.l.b16 %v797
          %v837 = vunpack.c.l.b16 %v798
          %v838 = vunpack.c.l.b16 %v799
          %v839 = vunpack.c.l.b16 %v800
          %v840 = vunpack.c.l.b16 %v801
          %v841 = vunpack.c.l.b16 %v802
          %v842 = vunpack.c.l.b16 %v803
          %v843 = vunpack.c.l.b16 %v804
          %v844 = vpack.c.b16 %v829, %v828
          %v845 = vpack.c.b16 %v831, %v830
          %v846 = vpack.c.b16 %v833, %v832
          %v847 = vpack.c.b16 %v835, %v834
          %v848 = vpack.c.b16 %v837, %v836
          %v849 = vpack.c.b16 %v839, %v838
          %v850 = vpack.c.b16 %v841, %v840
          %v851 = vpack.c.b16 %v843, %v842
          %860 = vmatprep.subr.bf16.mxu0 0
          %861 = vmatpush1.bf16.msra.mxu0 %v844
          %862 = vmatprep.subr.bf16.mxu0 0
          %863 = vmatpush1.bf16.msra.mxu0 %v845
          %864 = vmatprep.subr.bf16.mxu0 0
          %865 = vmatpush1.bf16.msra.mxu0 %v846
          %866 = vmatprep.subr.bf16.mxu0 0
          %867 = vmatpush1.bf16.msra.mxu0 %v847
          %868 = vmatprep.subr.bf16.mxu0 0
          %869 = vmatpush1.bf16.msra.mxu0 %v848
          %870 = vmatprep.subr.bf16.mxu0 0
          %871 = vmatpush1.bf16.msra.mxu0 %v849
          %872 = vmatprep.subr.bf16.mxu0 0
          %873 = vmatpush1.bf16.msra.mxu0 %v850
          %874 = vmatprep.subr.bf16.mxu0 0
          %875 = vmatpush1.bf16.msra.mxu0 %v851
          %876 = vmatprep.subr.bf16.mxu0 0
          %877 = vmatpush1.bf16.msra.mxu0 0
          %878 = vmatprep.subr.bf16.mxu0 0
          %879 = vmatpush1.bf16.msra.mxu0 0
          %880 = vmatprep.subr.bf16.mxu0 0
          %881 = vmatpush1.bf16.msra.mxu0 0
          %882 = vmatprep.subr.bf16.mxu0 0
          %883 = vmatpush1.bf16.msra.mxu0 0
          %884 = vmatprep.subr.bf16.mxu0 0
          %885 = vmatpush1.bf16.msra.mxu0 0
          %886 = vmatprep.subr.bf16.mxu0 0
          %887 = vmatpush1.bf16.msra.mxu0 0
          %888 = vmatprep.subr.bf16.mxu0 0
          %889 = vmatpush1.bf16.msra.mxu0 0
          %890 = vmatprep.subr.bf16.mxu0 0
          %891 = vmatpush1.bf16.msra.mxu0 0
          %892 = vmatprep.mubr.bf16.mxu0 0
          %893 = vmatmul.mubr.bf16.gmra.mrb[0].mxu0 %v788
          %v894 = vpop.f32.mrb[0].mxu0
          %v895 = vadd.f32 %v810, %v894
          %v896 = vpop.f32.mrb[0].mxu0
          %v897 = vpop.f32.mrb[0].mxu0
          %v898 = vpop.f32.mrb[0].mxu0
          %899 = vdwg.mxu0
          %900 = vst [vmem:[#allocation3] sm:$0x3] %v895
        $region56: #{surrogate_forward.1} parent=47 // pred_fallthru
          _
        // Predicated region
        $region57: #{surrogate_forward.1} parent=47 // pred_check
          %p901 = pneg %p189
        $region58: #{surrogate_forward.1} parent=47 // pred_check_branch
          %903 = sbr.rel (%p901) target = $region60
        $region59: #{surrogate_forward.1} parent=47 // pred_region
          %s905 = ssub.s32 32, 32
          %906 = vsyncadd [#allocation4], %s905
          %s908 = sshll.u32 [#allocation3], 4
          %s909 = int_to_ptr.vmem [resolvable:$true] %s908
          %911 = dma.vmem_to_hbm [thread:$0]  %s909, 32, %s7, [#allocation4]
        $region60: #{surrogate_forward.1} parent=47 // pred_fallthru
          _
        // Predicated region
        $region61: #{surrogate_forward.1} parent=47 // pred_check
          %p912 = pneg %p189
        $region62: #{surrogate_forward.1} parent=47 // pred_check_branch
          %914 = sbr.rel (%p912) target = $region64
        $region63: #{surrogate_forward.1} parent=47 // pred_region
          %915 = dma.done [#allocation4], 32
        $region64: #{surrogate_forward.1} parent=47 // pred_fallthru
          _
      $region48: #{surrogate_forward.1} parent=5 // pred_fallthru
        _
      %p916 = scmp.le.s32.totalorder 2, %s14
      // Predicated region
      $region65: #{surrogate_forward.1} parent=5 // pred_check
        %p917 = pneg %p916
      $region66: #{surrogate_forward.1} parent=5 // pred_check_branch
        %919 = sbr.rel (%p917) target = $region68
      $region67: #{surrogate_forward.1} parent=5 // pred_region
        %s920 = ssub.s32 %s14, 2
      $region68: #{surrogate_forward.1} parent=5 // pred_fallthru
        _
    $region6: #{surrogate_forward.1} parent=1 // loop_footer
      %s18 = sadd.s32 1, %s14
    $region7: #{surrogate_forward.1} parent=1 // loop_footer_branch
      %13 = sbr.rel target = $region3
    $region8: #{surrogate_forward.1} parent=1 // loop_exit
      _
    %921 = vsyncpa [#allocation4], 1
    %s922 = scalar_lea.sflag [#allocation4], 1
    %923 = vsyncpa %s922, 1

</llo_original>
